<compile_context>
chip_gen: v7x
topology: tpu7x:2x2x1
jax: 0.10.0
libtpu: 0.0.40
codegen_flags: <defaults>
</compile_context>

<pallas_src>
import jax
import jax.numpy as jnp
from jax.experimental import pallas as pl
from jax.experimental.pallas import tpu as pltpu


_FAST_PATH_BYTES = 4 << 20       # below this, a lazy jnp.broadcast_to wins
_TARGET_BLOCK_BYTES = 8 << 20    # ~8 MiB output block per grid step
_PIPELINE_BUDGET = 48 << 20      # 2x output block + 2x input block ceiling


def _round_up(x: int, m: int) -> int:
    return ((x + m - 1) // m) * m


def _cdiv(a: int, b: int) -> int:
    return (a + b - 1) // b


def _sublane(itemsize: int) -> int:
    return {4: 8, 2: 16, 1: 32}.get(itemsize, 8)


def _hw_limits():
    """Best-effort (physical VMEM bytes per TensorCore, TensorCores per chip)."""
    kind = ""
    try:
        kind = jax.devices()[0].device_kind.lower()
    except Exception:
        pass
    is_v7 = ("v7" in kind) or ("7x" in kind)
    num_tc = 2 if is_v7 else 1
    vmem_phys = (64 << 20) if is_v7 else (128 << 20)
    try:
        vmem_phys = int(pltpu.get_tpu_info().vmem_capacity_bytes)
    except Exception:
        pass
    return vmem_phys, num_tc


def _vmem_limit(used_bytes: int, vmem_phys: int) -> int:
    limit = max(32 << 20, used_bytes + (4 << 20))
    return int(min(limit, vmem_phys - (4 << 20)))


# ---------------------------------------------------------------------------
# Kernels
# ---------------------------------------------------------------------------

def _broadcast_rows_kernel(emb_ref, out_ref):
    # emb_ref: (1, N) parameter row; constant block index -> resident in VMEM,
    #          fetched from HBM exactly once.
    # out_ref: (rows, N) lane-dense output block (N == full flattened width, so
    #          stores are unmasked full-lane vst independent of P and D).
    out_ref[...] = jnp.broadcast_to(emb_ref[...], out_ref.shape)


def _broadcast_slots_kernel(emb_ref, out_ref):
    # Fallback layout. emb_ref: (P, D); out_ref: (b_tile, P, D).
    out_ref[...] = jnp.broadcast_to(emb_ref[...][None, :, :], out_ref.shape)


# ---------------------------------------------------------------------------
# Planning
# ---------------------------------------------------------------------------

def _plan_flat(batch: int, n: int, itemsize: int, num_tc: int):
    """Rows-per-block for the flattened (batch, P*D) layout.

    Returns None if no legal flat block (rows multiple of 8, or rows == batch)
    fits the VMEM budget (huge single rows) — caller falls back to 3D layout.
    """
    sublane = _sublane(itemsize)
    row_bytes = _round_up(n, 128) * itemsize
    in_block = sublane * _round_up(n, 128) * itemsize        # (1, N) padded
    max_rows = max(
        1, (_PIPELINE_BUDGET // 2 - 2 * in_block) // row_bytes - sublane)
    rows = min(batch, max(1, _TARGET_BLOCK_BYTES // row_bytes), max_rows)
    if rows >= batch:
        return batch                                          # single block
    if rows < 8:
        return None                      # can't form a legal sublane block
    rows = (rows // 8) * 8
    if num_tc > 1 and _cdiv(batch, rows) % num_tc != 0:
        # Best effort: keep the grid length a multiple of the core count so a
        # purely bandwidth-bound kernel splits evenly across v7x's two TCs.
        for r in range(rows, 0, -8):
            if _cdiv(batch, r) % num_tc == 0:
                rows = r
                break
    return rows


def _plan_3d(batch: int, P: int, D: int, itemsize: int, num_tc: int) -> int:
    """Batch slots per block for the (b_tile, P, D) fallback layout."""
    slot = _round_up(P, _sublane(itemsize)) * _round_up(D, 128) * itemsize
    max_slots = max(1, (_PIPELINE_BUDGET // 2 - 2 * slot) // slot)
    b = min(batch, max(1, _TARGET_BLOCK_BYTES // slot), max_slots)
    if num_tc > 1 and b < batch:
        steps = _round_up(_cdiv(batch, b), num_tc)
        b = max(1, _cdiv(batch, steps))
    return b


# ---------------------------------------------------------------------------
# Forward
# ---------------------------------------------------------------------------

def prefix_tuning_forward(prefix_embeddings: jax.Array, batch_size: int,
                          *, force_kernel: bool = False) -> jax.Array:
    """Pallas equivalent of PrefixTuning.forward(batch_size, device).

    Args:
      prefix_embeddings: (prefix_length, hidden) learned parameter.
      batch_size: number of batch slots to broadcast into.
      force_kernel: skip the small-output fast path (testing only).

    Returns:
      (batch_size, prefix_length, hidden) array with the parameter's dtype.
    """
    P, D = prefix_embeddings.shape
    dtype = prefix_embeddings.dtype
    itemsize = jnp.dtype(dtype).itemsize
    out_bytes = batch_size * P * D * itemsize

    if not force_kernel and out_bytes < _FAST_PATH_BYTES:
        # Tiny output: pallas_call fixed cost dwarfs the copy; a lazy XLA
        # broadcast (often fused into the consumer) is strictly better.
        return jnp.broadcast_to(prefix_embeddings[None], (batch_size, P, D))

    vmem_phys, num_tc = _hw_limits()
    n = P * D
    rows = _plan_flat(batch_size, n, itemsize, num_tc)

    if rows is not None:
        # Lane-dense path: flatten to (batch, P*D); reshape back is free.
        emb_flat = prefix_embeddings.reshape(1, n)
        lane_n = _round_up(n, 128)
        out_block = _round_up(rows, _sublane(itemsize)) * lane_n * itemsize
        in_block = _sublane(itemsize) * lane_n * itemsize
        used = 2 * out_block + 2 * in_block

        out_flat = pl.pallas_call(
            _broadcast_rows_kernel,
            out_shape=jax.ShapeDtypeStruct((batch_size, n), dtype),
            grid_spec=pltpu.PrefetchScalarGridSpec(
                num_scalar_prefetch=0,
                grid=(_cdiv(batch_size, rows),),
                in_specs=[
                    # Same (1, N) parameter block every step -> resident.
                    pl.BlockSpec((1, n), lambda b: (0, 0)),
                ],
                # Large fused, lane-dense output block; edge block is clipped.
                out_specs=pl.BlockSpec((rows, n), lambda b: (b, 0)),
            ),
            compiler_params=pltpu.CompilerParams(
                dimension_semantics=("parallel",),
                vmem_limit_bytes=_vmem_limit(used, vmem_phys),
            ),
            cost_estimate=pl.CostEstimate(
                flops=0, transcendentals=0,
                bytes_accessed=out_bytes + n * itemsize),
        )(emb_flat)
        return out_flat.reshape(batch_size, P, D)

    # Rare fallback: a single flattened row is too large for a legal flat
    # block.  Use the (b_tile, P, D) layout; the last two block dims equal the
    # full array dims, so any b_tile is legal.
    b_tile = _plan_3d(batch_size, P, D, itemsize, num_tc)
    slot = _round_up(P, _sublane(itemsize)) * _round_up(D, 128) * itemsize
    used = (2 * b_tile + 2) * slot

    return pl.pallas_call(
        _broadcast_slots_kernel,
        out_shape=jax.ShapeDtypeStruct((batch_size, P, D), dtype),
        grid_spec=pltpu.PrefetchScalarGridSpec(
            num_scalar_prefetch=0,
            grid=(_cdiv(batch_size, b_tile),),
            in_specs=[pl.BlockSpec((P, D), lambda b: (0, 0))],
            out_specs=pl.BlockSpec((b_tile, P, D), lambda b: (b, 0, 0)),
        ),
        compiler_params=pltpu.CompilerParams(
            dimension_semantics=("parallel",),
            vmem_limit_bytes=_vmem_limit(used, vmem_phys),
        ),
        cost_estimate=pl.CostEstimate(
            flops=0, transcendentals=0,
            bytes_accessed=out_bytes + P * D * itemsize),
    )(prefix_embeddings)


class PrefixTuningJAX:
    """Minimal JAX-side mirror of the PyTorch module (parameter container)."""

    def __init__(self, hidden_size: int, prefix_length: int = 20,
                 dtype=jnp.float32, key=None):
        if key is None:
            key = jax.random.PRNGKey(0)
        self.prefix_length = prefix_length
        self.embedding_dim = hidden_size
        self.dtype = dtype
        # torch.randn(prefix_length, hidden_size) -> standard normal init
        self.prefix_embeddings = jax.random.normal(
            key, (prefix_length, hidden_size), dtype=dtype)

    def forward(self, batch_size: int) -> jax.Array:
        return prefix_tuning_forward(self.prefix_embeddings, batch_size)


if __name__ == "__main__":
    key = jax.random.PRNGKey(0)
    batch_size, prefix_length, hidden_size = 2, 8, 32

    module = PrefixTuningJAX(hidden_size=hidden_size,
                             prefix_length=prefix_length,
                             dtype=jnp.float32, key=key)

    ref = jnp.broadcast_to(module.prefix_embeddings[None],
                           (batch_size, prefix_length, hidden_size))

    # 1) Module-default tiny shape: fast path (lazy broadcast, no kernel).
    out = jax.block_until_ready(module.forward(batch_size))
    assert out.shape == (batch_size, prefix_length, hidden_size), out.shape
    assert out.dtype == jnp.float32
    assert bool(jnp.array_equal(out, ref))

    # 2) Same tiny shape forced through the Pallas kernel (single flat block).
    out_k = jax.block_until_ready(
        prefix_tuning_forward(module.prefix_embeddings, batch_size,
                              force_kernel=True))
    assert bool(jnp.array_equal(out_k, ref))

    # 3) Large output: natural kernel path, multi-step grid with a partial
    #    last block (lane-dense flattened layout, multiple-of-8-row blocks).
    emb_big = jax.random.normal(jax.random.PRNGKey(1), (20, 2048),
                                dtype=jnp.float32)
    bs = 128
    out_big = jax.block_until_ready(prefix_tuning_forward(emb_big, bs))
    ref_big = jnp.broadcast_to(emb_big[None], (bs, 20, 2048))
    assert bool(jnp.array_equal(out_big, ref_big))

    # 4) Huge-row shape that exercises the (b_tile, P, D) fallback layout
    #    (single flattened row ~1.25 MiB -> no legal multiple-of-8 flat block).
    emb_wide = jax.random.normal(jax.random.PRNGKey(2), (8, 40960),
                                 dtype=jnp.float32)
    bs2 = 9
    out_wide = jax.block_until_ready(prefix_tuning_forward(emb_wide, bs2))
    ref_wide = jnp.broadcast_to(emb_wide[None], (bs2, 8, 40960))
    assert bool(jnp.array_equal(out_wide, ref_wide))

    print("KERNEL_OK")
</pallas_src>

<mosaic_0001>
module attributes {stable_mosaic.version = 11 : i64} {
  func.func @_broadcast_rows_kernel(%arg0: i32, %arg1: memref<1x256xf32, #tpu.memory_space<vmem>>, %arg2: memref<2x256xf32, #tpu.memory_space<vmem>>) attributes {dimension_semantics = [#tpu.dimension_semantics<parallel>], iteration_bounds = array<i64: 1>, scalar_prefetch = 0 : i64, scratch_operands = 0 : i64, tpu.core_type = #tpu.core_type<tc>, window_params = [{pipeline_mode = #tpu.pipeline_mode<synchronous>, transform_indices = @transform_0, window_bounds = array<i64: 1, 256>}, {transform_indices = @transform_1, window_bounds = array<i64: 2, 256>}]} {
    %c0 = arith.constant 0 : index
    %c0_0 = arith.constant 0 : index
    %0 = vector.load %arg1[%c0, %c0_0] : memref<1x256xf32, #tpu.memory_space<vmem>>, vector<1x256xf32>
    %1 = vector.shape_cast %0 : vector<1x256xf32> to vector<1x256xf32>
    %2 = vector.broadcast %1 : vector<1x256xf32> to vector<2x256xf32>
    %c0_1 = arith.constant 0 : index
    %c0_2 = arith.constant 0 : index
    %3 = vector.load %arg2[%c0_1, %c0_2] : memref<2x256xf32, #tpu.memory_space<vmem>>, vector<2x256xf32>
    tpu.vector_store %arg2[%c0_1, %c0_2], %2 {strides = array<i32>} : memref<2x256xf32, #tpu.memory_space<vmem>>, vector<2x256xf32>,
    return
  }
  func.func @transform_0(%arg0: i32) -> (i32, i32) {
    %c0_i32 = arith.constant 0 : i32
    %c0_i32_0 = arith.constant 0 : i32
    %c0_i32_1 = arith.constant 0 : i32
    return %c0_i32, %c0_i32_0 : i32, i32
  }
  func.func @transform_1(%arg0: i32) -> (i32, i32) {
    %c0_i32 = arith.constant 0 : i32
    %c0_i32_0 = arith.constant 0 : i32
    return %arg0, %c0_i32 : i32, i32
  }
}

</mosaic_0001>

<llo_original>
// kernel: tpu_custom_call.1
$region0: #{tpu_custom_call.1}
  #allocation0 [shape = 'u32[]', space=smem, size = 0x4, offset = 0x4, fixed_abs, tag = 'smem constant byte address 0x4 - core index']
  #allocation1 [shape = 'u32[144,128]{1,0:T(1,128)}', space=vmem, size = 0x12000, scoped, tag = 'internal scratch']
  %s0 = inlined_call_operand.hbm [shape: f32[1,256], index: 0, kind: input, shape index: {}]
  %s1 = inlined_call_operand.hbm [shape: f32[2,256], index: 1, kind: output, shape index: {}]
  %s2 = sld [smem:[#allocation0]]
  $region18: #{tpu_custom_call.1} parent=0
    _
  %s4 = ssub.s32 1, %s2
  %s5 = scalar_select 0, %s4, %s2
  $region1: #{tpu_custom_call.1} parent=0
    #allocation2 [shape = 'u8[1024]{0}', space=vmem, size = 0x400, scoped, tag = 'input window, operand 0, single buffered']
    #allocation3 [shape = 's32[1]{0}', space=sflag, size = 0x4, scoped, tag = 'scoped memory for tpu_custom_call.1']
    #allocation4 [shape = 's32[1]{0}', space=sflag, size = 0x4, scoped, tag = 'scoped memory for tpu_custom_call.1']
    #allocation5 [shape = 'u8[2048]{0}', space=vmem, size = 0x800, scoped, tag = 'output window, operand 0, single buffered']
    %6 = vsyncpa [#allocation3], 0
    %7 = vsyncpa [#allocation4], 0
    // Predicated region
    $region2: #{tpu_custom_call.1} parent=1 // pred_check
      _
    $region3: #{tpu_custom_call.1} parent=1 // pred_check_branch
      %9 = sbr.rel (0) target = $region5
    $region4: #{tpu_custom_call.1} parent=1 // pred_region
      %s11 = ssub.s32 32, 32
      %12 = vsyncadd [#allocation3], %s11
      %s14 = sshll.u32 [#allocation2], 4
      %s15 = int_to_ptr.vmem [resolvable:$true] %s14
      %17 = dma.hbm_to_vmem [thread:$0]  %s0, 32, %s15, [#allocation3]
    $region5: #{tpu_custom_call.1} parent=1 // pred_fallthru
      _
    // Predicated region
    $region6: #{tpu_custom_call.1} parent=1 // pred_check
      _
    $region7: #{tpu_custom_call.1} parent=1 // pred_check_branch
      %19 = sbr.rel (0) target = $region9
    $region8: #{tpu_custom_call.1} parent=1 // pred_region
      %20 = dma.done [#allocation3], 32
    $region9: #{tpu_custom_call.1} parent=1 // pred_fallthru
      _
    %v21 = vld [vmem:[#allocation2] sm:$0x3]
    %v23 = vlaneseq
    %v24 = vshrl.u32 %v23, 7
    %v25 = vsub.s32 0, %v24
    %v26 = vrot.slane %v21, %v25
    %v27 = vlaneseq
    %v28 = vshrl.u32 %v27, 7
    %v29 = vsub.s32 1, %v28
    %v30 = vrot.slane %v21, %v29
    %v31 = vcombine.low %v26, %v30
    %v33 = vunpack.c.l.s4 1983009808
    %v34 = vunpack.c.0.s8 %v33
    %v35 = vlaneseq
    %v36 = vshrl.u32 %v35, 7
    %v37 = vsub.s32 %v34, %v36
    %v38 = vrot.slane %v31, %v37
    %40 = vst [vmem:[#allocation5] sm:$0xf] %v38
    // Predicated region
    $region10: #{tpu_custom_call.1} parent=1 // pred_check
      _
    $region11: #{tpu_custom_call.1} parent=1 // pred_check_branch
      %42 = sbr.rel (0) target = $region13
    $region12: #{tpu_custom_call.1} parent=1 // pred_region
      %s44 = ssub.s32 64, 64
      %45 = vsyncadd [#allocation4], %s44
      %s47 = sshll.u32 [#allocation5], 4
      %s48 = int_to_ptr.vmem [resolvable:$true] %s47
      %50 = dma.vmem_to_hbm [thread:$0]  %s48, 64, %s1, [#allocation4]
    $region13: #{tpu_custom_call.1} parent=1 // pred_fallthru
      _
    // Predicated region
    $region14: #{tpu_custom_call.1} parent=1 // pred_check
      _
    $region15: #{tpu_custom_call.1} parent=1 // pred_check_branch
      %52 = sbr.rel (0) target = $region17
    $region16: #{tpu_custom_call.1} parent=1 // pred_region
      %53 = dma.done [#allocation4], 64
    $region17: #{tpu_custom_call.1} parent=1 // pred_fallthru
      _
    %54 = vsyncpa [#allocation3], 1
    %55 = vsyncpa [#allocation4], 1

</llo_original>
